<compile_context>
chip_gen: v5e
topology: v5e:2x2
jax: 0.10.0
libtpu: 0.0.40
codegen_flags: <defaults>
</compile_context>

<pallas_src>
import numpy as np
import jax
import jax.numpy as jnp
from jax import lax
from jax.experimental import pallas as pl
from jax.experimental.pallas import tpu as pltpu

B = 2      # batch (queries)
N = 8      # passages per query (labels.shape[1])
F = 16     # synthetic token-feature dim fed to the stand-in psg encoder
D = 32     # sentence-embedding dim
LAMBDA_VAL = 0.1   # only consumed by the untranslatable OptimCluster solver
REG_CONST = 0.5


def _bb_cluster_rnn_loss_kernel(
    feats_ref,    # (B*N, F) VMEM  flattened passage features
    w_ref,        # (F, D)   VMEM  synthetic psg_model projection weight
    b_ref,        # (1, D)   VMEM  synthetic psg_model projection bias
    lab_row_ref,  # (B, 1, N) VMEM f32 labels (row layout)
    lab_col_ref,  # (B, N, 1) VMEM f32 labels (col layout)
    scale_ref,    # (1,) SMEM f32  scaling_vector (== 0 in the torch reference)
    out_ref,      # (1, 8) VMEM f32: [sim_num, sim_den, dis_num, dis_den, err_sum, 0,0,0]
):
    bsz = lab_row_ref.shape[0]
    n = lab_col_ref.shape[1]
    d = w_ref.shape[1]

    # --- synthetic psg_model: linear + tanh, one MXU matmul over the whole batch ---
    # TODO(synk): the real psg_model is a full CustomSentenceTransformer; it is
    # replaced by a deterministic linear+tanh encoder (same (B, N, D) output shape).
    x = feats_ref[...].astype(jnp.float32)
    emb = jnp.tanh(
        jnp.dot(x, w_ref[...], preferred_element_type=jnp.float32) + b_ref[...]
    )  # (B*N, D)

    # scaled_psg_embeddings = scaling_vector * psg_embeddings
    # (scaling_vector is literally torch.tensor([0]) in the reference forward.)
    scale = scale_ref[0]          # SMEM scalar read
    xs = emb * scale              # (B*N, D)

    # Squared row norms for the whole batch, in both layouts, no eye mask:
    #   column layout via a native lane reduce, row layout via a tiny MXU matmul
    #   against a ones vector (avoids any in-kernel transpose / masked reduce).
    sq = xs * xs                                                  # (B*N, D)
    norms_col = jnp.sum(sq, axis=1, keepdims=True)                # (B*N, 1)
    ones_d = jnp.ones((1, d), jnp.float32)
    norms_row = lax.dot_general(                                  # (1, B*N)
        ones_d, sq, (((1,), (1,)), ((), ())), preferred_element_type=jnp.float32
    )

    sim_num = 0.0
    sim_den = 0.0
    dis_num = 0.0
    dis_den = 0.0
    err_sum = 0.0

    for b in range(bsz):  # tiny unrolled batch loop inside the single grid step
        xb = xs[b * n:(b + 1) * n, :]                             # (N, D)
        nc = norms_col[b * n:(b + 1) * n, :]                      # (N, 1)
        nr = norms_row[:, b * n:(b + 1) * n]                      # (1, N)

        # euclid_dist: dist[i,j] = sqrt(||x_i||^2 + ||x_j||^2 - 2 <x_i, x_j>)
        gram = lax.dot_general(
            xb, xb, (((1,), (1,)), ((), ())), preferred_element_type=jnp.float32
        )                                                         # (N, N)
        dist = jnp.sqrt(jnp.maximum(nc + nr - 2.0 * gram, 0.0))   # (N, N)

        # true adjacency: label[i] == label[j] (diagonal is automatically 1,
        # so the explicit `or i == j` / eye max is redundant).
        true_adj = (lab_row_ref[b] == lab_col_ref[b]).astype(jnp.float32)  # (N, N)
        not_adj = 1.0 - true_adj

        sim_num += jnp.sum(dist * true_adj)
        sim_den += jnp.sum(true_adj)
        dis_num += jnp.sum(dist * not_adj)
        dis_den += jnp.sum(not_adj)

        # TODO(synk): OptimCluster.apply is a blackbox combinatorial clustering
        # solver (no Pallas equivalent); deterministic surrogate: threshold the
        # distance matrix at its mean to get a predicted adjacency matrix.
        d_mean = jnp.sum(dist) * (1.0 / float(n * n))
        adj_pred = (dist <= d_mean).astype(jnp.float32)
        err_sum += jnp.sum(adj_pred * not_adj + (1.0 - adj_pred) * true_adj)

    # Single merged output write (one store / one writeback DMA).
    lane = lax.broadcasted_iota(jnp.int32, (1, 8), 1)
    out_ref[...] = (
        jnp.where(lane == 0, sim_num, 0.0)
        + jnp.where(lane == 1, sim_den, 0.0)
        + jnp.where(lane == 2, dis_num, 0.0)
        + jnp.where(lane == 3, dis_den, 0.0)
        + jnp.where(lane == 4, err_sum, 0.0)
    )


def bb_cluster_rnn_loss(passage_feats, labels, w, bias, lambda_val, reg_const):
    bsz, n, f = passage_feats.shape
    d = w.shape[1]

    feats2d = passage_feats.reshape(bsz * n, f).astype(jnp.float32)
    labels_f = labels.astype(jnp.float32)
    lab_row = labels_f.reshape(bsz, 1, n)
    lab_col = labels_f.reshape(bsz, n, 1)
    scale = jnp.zeros((1,), jnp.float32)   # scaling_vector = torch.tensor([0])

    # ks = #unique labels per query — only consumed by the untranslatable
    # OptimCluster solver, so it is computed for parity but unused here.
    ks = [int(np.unique(np.asarray(labels[i])).size) for i in range(bsz)]
    del ks, lambda_val  # TODO(synk): feed to OptimCluster when a solver exists

    out = pl.pallas_call(
        _bb_cluster_rnn_loss_kernel,
        out_shape=jax.ShapeDtypeStruct((1, 8), jnp.float32),
        grid=(1,),   # whole batch in a single grid step
        in_specs=[
            pl.BlockSpec((bsz * n, f), lambda i: (0, 0)),        # flattened feats
            pl.BlockSpec((f, d), lambda i: (0, 0)),              # W
            pl.BlockSpec((1, d), lambda i: (0, 0)),              # bias
            pl.BlockSpec((bsz, 1, n), lambda i: (0, 0, 0)),      # labels (row)
            pl.BlockSpec((bsz, n, 1), lambda i: (0, 0, 0)),      # labels (col)
            pl.BlockSpec(memory_space=pltpu.MemorySpace.SMEM),   # scaling vector
        ],
        out_specs=pl.BlockSpec((1, 8), lambda i: (0, 0)),
        compiler_params=pltpu.CompilerParams(
            dimension_semantics=("arbitrary",)
        ),
    )(feats2d, w, bias, lab_row, lab_col, scale)

    sim_num = out[0, 0]
    sim_den = out[0, 1]
    dis_num = out[0, 2]
    dis_den = out[0, 3]
    err_sum = out[0, 4]

    mean_similar = sim_num / sim_den
    mean_dissimilar = dis_num / dis_den
    err_mean = err_sum / bsz               # err_mats.mean(dim=0).sum()
    loss = err_mean + reg_const * (mean_similar - mean_dissimilar)
    return loss


if __name__ == "__main__":
    key = jax.random.PRNGKey(0)
    k1, k2, k3 = jax.random.split(key, 3)

    # deterministic synthetic inputs / parameters
    passage_feats = jax.random.normal(k1, (B, N, F), dtype=jnp.float32)
    w = jax.random.normal(k2, (F, D), dtype=jnp.float32) * 0.1
    bias = jax.random.normal(k3, (1, D), dtype=jnp.float32) * 0.01
    labels = jnp.array(
        [[0, 0, 1, 1, 2, 2, 3, 3],
         [0, 1, 0, 1, 0, 1, 0, 1]], dtype=jnp.int32
    )

    loss = bb_cluster_rnn_loss(passage_feats, labels, w, bias,
                               LAMBDA_VAL, REG_CONST)
    jax.block_until_ready(loss)
    assert loss.shape == () and bool(jnp.isfinite(loss))
    print("KERNEL_OK")
</pallas_src>

<mosaic_0001>
module attributes {stable_mosaic.version = 11 : i64} {
  func.func @_bb_cluster_rnn_loss_kernel(%arg0: i32, %arg1: memref<16x16xf32, #tpu.memory_space<vmem>>, %arg2: memref<16x32xf32, #tpu.memory_space<vmem>>, %arg3: memref<1x32xf32, #tpu.memory_space<vmem>>, %arg4: memref<2x1x8xf32, #tpu.memory_space<vmem>>, %arg5: memref<2x8x1xf32, #tpu.memory_space<vmem>>, %arg6: memref<1xf32, #tpu.memory_space<smem>>, %arg7: memref<1x8xf32, #tpu.memory_space<vmem>>) attributes {dimension_semantics = [#tpu.dimension_semantics<arbitrary>], iteration_bounds = array<i64: 1>, scalar_prefetch = 0 : i64, scratch_operands = 0 : i64, tpu.core_type = #tpu.core_type<tc>, window_params = [{pipeline_mode = #tpu.pipeline_mode<synchronous>, transform_indices = @transform_0, window_bounds = array<i64: 16, 16>}, {pipeline_mode = #tpu.pipeline_mode<synchronous>, transform_indices = @transform_1, window_bounds = array<i64: 16, 32>}, {pipeline_mode = #tpu.pipeline_mode<synchronous>, transform_indices = @transform_2, window_bounds = array<i64: 1, 32>}, {pipeline_mode = #tpu.pipeline_mode<synchronous>, transform_indices = @transform_3, window_bounds = array<i64: 2, 1, 8>}, {pipeline_mode = #tpu.pipeline_mode<synchronous>, transform_indices = @transform_4, window_bounds = array<i64: 2, 8, 1>}, {transform_indices = @transform_5, window_bounds = array<i64: 1>}, {pipeline_mode = #tpu.pipeline_mode<synchronous>, transform_indices = @transform_6, window_bounds = array<i64: 1, 8>}]} {
    %c0 = arith.constant 0 : index
    %c0_0 = arith.constant 0 : index
    %0 = vector.load %arg1[%c0, %c0_0] : memref<16x16xf32, #tpu.memory_space<vmem>>, vector<16x16xf32>
    %c0_1 = arith.constant 0 : index
    %c0_2 = arith.constant 0 : index
    %1 = vector.load %arg2[%c0_1, %c0_2] : memref<16x32xf32, #tpu.memory_space<vmem>>, vector<16x32xf32>
    %cst = arith.constant dense<0.000000e+00> : vector<16x32xf32>
    %2 = tpu.matmul %0, %1, %cst {dimension_numbers = #tpu.dot_dimension_numbers<[1], [0], [0], [1], [0, 0, 1, 1], [], []>} : vector<16x16xf32>, vector<16x32xf32>, vector<16x32xf32> -> vector<16x32xf32>
    %c0_3 = arith.constant 0 : index
    %c0_4 = arith.constant 0 : index
    %3 = vector.load %arg3[%c0_3, %c0_4] : memref<1x32xf32, #tpu.memory_space<vmem>>, vector<1x32xf32>
    %4 = vector.broadcast %3 : vector<1x32xf32> to vector<16x32xf32>
    %5 = arith.addf %2, %4 : vector<16x32xf32>
    %6 = math.tanh %5 : vector<16x32xf32>
    %c0_5 = arith.constant 0 : index
    %7 = memref.load %arg6[%c0_5] : memref<1xf32, #tpu.memory_space<smem>>
    %8 = vector.broadcast %7 : f32 to vector<16x32xf32>
    %9 = arith.mulf %6, %8 : vector<16x32xf32>
    %10 = arith.mulf %9, %9 : vector<16x32xf32>
    %cst_6 = arith.constant dense<0.000000e+00> : vector<16xf32>
    %11 = vector.multi_reduction <add>, %10, %cst_6 [1] : vector<16x32xf32> to vector<16xf32>
    %12 = vector.shape_cast %11 : vector<16xf32> to vector<16x1xf32>
    %cst_7 = arith.constant 1.000000e+00 : f32
    %13 = vector.broadcast %cst_7 : f32 to vector<1x32xf32>
    %cst_8 = arith.constant dense<0.000000e+00> : vector<1x16xf32>
    %14 = tpu.matmul %13, %10, %cst_8 {dimension_numbers = #tpu.dot_dimension_numbers<[1], [1], [0], [0], [0, 0, 1, 0], [], []>} : vector<1x32xf32>, vector<16x32xf32>, vector<1x16xf32> -> vector<1x16xf32>
    %15 = vector.extract_strided_slice %9 {offsets = [0, 0], sizes = [8, 32], strides = [1, 1]} : vector<16x32xf32> to vector<8x32xf32>
    %16 = vector.extract_strided_slice %12 {offsets = [0, 0], sizes = [8, 1], strides = [1, 1]} : vector<16x1xf32> to vector<8x1xf32>
    %17 = vector.extract_strided_slice %14 {offsets = [0, 0], sizes = [1, 8], strides = [1, 1]} : vector<1x16xf32> to vector<1x8xf32>
    %cst_9 = arith.constant dense<0.000000e+00> : vector<8x8xf32>
    %18 = tpu.matmul %15, %15, %cst_9 {dimension_numbers = #tpu.dot_dimension_numbers<[1], [1], [0], [0], [0, 0, 1, 0], [], []>} : vector<8x32xf32>, vector<8x32xf32>, vector<8x8xf32> -> vector<8x8xf32>
    %19 = vector.broadcast %16 : vector<8x1xf32> to vector<8x8xf32>
    %20 = vector.broadcast %17 : vector<1x8xf32> to vector<8x8xf32>
    %21 = arith.addf %19, %20 : vector<8x8xf32>
    %cst_10 = arith.constant 2.000000e+00 : f32
    %22 = vector.broadcast %cst_10 : f32 to vector<8x8xf32>
    %23 = arith.mulf %22, %18 : vector<8x8xf32>
    %24 = arith.subf %21, %23 : vector<8x8xf32>
    %cst_11 = arith.constant 0.000000e+00 : f32
    %25 = vector.broadcast %cst_11 : f32 to vector<8x8xf32>
    %26 = arith.maximumf %24, %25 : vector<8x8xf32>
    %27 = math.sqrt %26 : vector<8x8xf32>
    %c0_12 = arith.constant 0 : index
    %c0_13 = arith.constant 0 : index
    %c0_14 = arith.constant 0 : index
    %28 = vector.load %arg4[%c0_12, %c0_13, %c0_14] : memref<2x1x8xf32, #tpu.memory_space<vmem>>, vector<1x1x8xf32>
    %29 = vector.shape_cast %28 : vector<1x1x8xf32> to vector<1x8xf32>
    %c0_15 = arith.constant 0 : index
    %c0_16 = arith.constant 0 : index
    %c0_17 = arith.constant 0 : index
    %30 = vector.load %arg5[%c0_15, %c0_16, %c0_17] : memref<2x8x1xf32, #tpu.memory_space<vmem>>, vector<1x8x1xf32>
    %31 = vector.shape_cast %30 : vector<1x8x1xf32> to vector<8x1xf32>
    %32 = vector.broadcast %29 : vector<1x8xf32> to vector<8x8xf32>
    %33 = vector.broadcast %31 : vector<8x1xf32> to vector<8x8xf32>
    %34 = arith.cmpf oeq, %32, %33 : vector<8x8xf32>
    %35 = arith.extui %34 : vector<8x8xi1> to vector<8x8xi32>
    %36 = arith.sitofp %35 : vector<8x8xi32> to vector<8x8xf32>
    %cst_18 = arith.constant 1.000000e+00 : f32
    %37 = vector.broadcast %cst_18 : f32 to vector<8x8xf32>
    %38 = arith.subf %37, %36 : vector<8x8xf32>
    %39 = arith.mulf %27, %36 : vector<8x8xf32>
    %40 = vector.shape_cast %39 : vector<8x8xf32> to vector<1x8x8xf32>
    %cst_19 = arith.constant dense<0.000000e+00> : vector<1xf32>
    %41 = vector.multi_reduction <add>, %40, %cst_19 [1, 2] : vector<1x8x8xf32> to vector<1xf32>
    %42 = vector.shape_cast %41 : vector<1xf32> to vector<1x1x1xf32>
    %43 = vector.extract %42[0, 0, 0] : f32 from vector<1x1x1xf32>
    %cst_20 = arith.constant 0.000000e+00 : f32
    %44 = arith.addf %cst_20, %43 : f32
    %45 = vector.shape_cast %36 : vector<8x8xf32> to vector<1x8x8xf32>
    %cst_21 = arith.constant dense<0.000000e+00> : vector<1xf32>
    %46 = vector.multi_reduction <add>, %45, %cst_21 [1, 2] : vector<1x8x8xf32> to vector<1xf32>
    %47 = vector.shape_cast %46 : vector<1xf32> to vector<1x1x1xf32>
    %48 = vector.extract %47[0, 0, 0] : f32 from vector<1x1x1xf32>
    %cst_22 = arith.constant 0.000000e+00 : f32
    %49 = arith.addf %cst_22, %48 : f32
    %50 = arith.mulf %27, %38 : vector<8x8xf32>
    %51 = vector.shape_cast %50 : vector<8x8xf32> to vector<1x8x8xf32>
    %cst_23 = arith.constant dense<0.000000e+00> : vector<1xf32>
    %52 = vector.multi_reduction <add>, %51, %cst_23 [1, 2] : vector<1x8x8xf32> to vector<1xf32>
    %53 = vector.shape_cast %52 : vector<1xf32> to vector<1x1x1xf32>
    %54 = vector.extract %53[0, 0, 0] : f32 from vector<1x1x1xf32>
    %cst_24 = arith.constant 0.000000e+00 : f32
    %55 = arith.addf %cst_24, %54 : f32
    %56 = vector.shape_cast %38 : vector<8x8xf32> to vector<1x8x8xf32>
    %cst_25 = arith.constant dense<0.000000e+00> : vector<1xf32>
    %57 = vector.multi_reduction <add>, %56, %cst_25 [1, 2] : vector<1x8x8xf32> to vector<1xf32>
    %58 = vector.shape_cast %57 : vector<1xf32> to vector<1x1x1xf32>
    %59 = vector.extract %58[0, 0, 0] : f32 from vector<1x1x1xf32>
    %cst_26 = arith.constant 0.000000e+00 : f32
    %60 = arith.addf %cst_26, %59 : f32
    %61 = vector.shape_cast %27 : vector<8x8xf32> to vector<1x8x8xf32>
    %cst_27 = arith.constant dense<0.000000e+00> : vector<1xf32>
    %62 = vector.multi_reduction <add>, %61, %cst_27 [1, 2] : vector<1x8x8xf32> to vector<1xf32>
    %63 = vector.shape_cast %62 : vector<1xf32> to vector<1x1x1xf32>
    %64 = vector.extract %63[0, 0, 0] : f32 from vector<1x1x1xf32>
    %cst_28 = arith.constant 1.562500e-02 : f32
    %65 = arith.mulf %64, %cst_28 : f32
    %66 = vector.broadcast %65 : f32 to vector<8x8xf32>
    %67 = arith.cmpf ole, %27, %66 : vector<8x8xf32>
    %68 = arith.extui %67 : vector<8x8xi1> to vector<8x8xi32>
    %69 = arith.sitofp %68 : vector<8x8xi32> to vector<8x8xf32>
    %70 = arith.mulf %69, %38 : vector<8x8xf32>
    %cst_29 = arith.constant 1.000000e+00 : f32
    %71 = vector.broadcast %cst_29 : f32 to vector<8x8xf32>
    %72 = arith.subf %71, %69 : vector<8x8xf32>
    %73 = arith.mulf %72, %36 : vector<8x8xf32>
    %74 = arith.addf %70, %73 : vector<8x8xf32>
    %75 = vector.shape_cast %74 : vector<8x8xf32> to vector<1x8x8xf32>
    %cst_30 = arith.constant dense<0.000000e+00> : vector<1xf32>
    %76 = vector.multi_reduction <add>, %75, %cst_30 [1, 2] : vector<1x8x8xf32> to vector<1xf32>
    %77 = vector.shape_cast %76 : vector<1xf32> to vector<1x1x1xf32>
    %78 = vector.extract %77[0, 0, 0] : f32 from vector<1x1x1xf32>
    %cst_31 = arith.constant 0.000000e+00 : f32
    %79 = arith.addf %cst_31, %78 : f32
    %80 = vector.extract_strided_slice %9 {offsets = [8, 0], sizes = [8, 32], strides = [1, 1]} : vector<16x32xf32> to vector<8x32xf32>
    %81 = vector.extract_strided_slice %12 {offsets = [8, 0], sizes = [8, 1], strides = [1, 1]} : vector<16x1xf32> to vector<8x1xf32>
    %82 = vector.extract_strided_slice %14 {offsets = [0, 8], sizes = [1, 8], strides = [1, 1]} : vector<1x16xf32> to vector<1x8xf32>
    %cst_32 = arith.constant dense<0.000000e+00> : vector<8x8xf32>
    %83 = tpu.matmul %80, %80, %cst_32 {dimension_numbers = #tpu.dot_dimension_numbers<[1], [1], [0], [0], [0, 0, 1, 0], [], []>} : vector<8x32xf32>, vector<8x32xf32>, vector<8x8xf32> -> vector<8x8xf32>
    %84 = vector.broadcast %81 : vector<8x1xf32> to vector<8x8xf32>
    %85 = vector.broadcast %82 : vector<1x8xf32> to vector<8x8xf32>
    %86 = arith.addf %84, %85 : vector<8x8xf32>
    %cst_33 = arith.constant 2.000000e+00 : f32
    %87 = vector.broadcast %cst_33 : f32 to vector<8x8xf32>
    %88 = arith.mulf %87, %83 : vector<8x8xf32>
    %89 = arith.subf %86, %88 : vector<8x8xf32>
    %cst_34 = arith.constant 0.000000e+00 : f32
    %90 = vector.broadcast %cst_34 : f32 to vector<8x8xf32>
    %91 = arith.maximumf %89, %90 : vector<8x8xf32>
    %92 = math.sqrt %91 : vector<8x8xf32>
    %c1 = arith.constant 1 : index
    %c0_35 = arith.constant 0 : index
    %c0_36 = arith.constant 0 : index
    %93 = vector.load %arg4[%c1, %c0_35, %c0_36] : memref<2x1x8xf32, #tpu.memory_space<vmem>>, vector<1x1x8xf32>
    %94 = vector.shape_cast %93 : vector<1x1x8xf32> to vector<1x8xf32>
    %c1_37 = arith.constant 1 : index
    %c0_38 = arith.constant 0 : index
    %c0_39 = arith.constant 0 : index
    %95 = vector.load %arg5[%c1_37, %c0_38, %c0_39] : memref<2x8x1xf32, #tpu.memory_space<vmem>>, vector<1x8x1xf32>
    %96 = vector.shape_cast %95 : vector<1x8x1xf32> to vector<8x1xf32>
    %97 = vector.broadcast %94 : vector<1x8xf32> to vector<8x8xf32>
    %98 = vector.broadcast %96 : vector<8x1xf32> to vector<8x8xf32>
    %99 = arith.cmpf oeq, %97, %98 : vector<8x8xf32>
    %100 = arith.extui %99 : vector<8x8xi1> to vector<8x8xi32>
    %101 = arith.sitofp %100 : vector<8x8xi32> to vector<8x8xf32>
    %cst_40 = arith.constant 1.000000e+00 : f32
    %102 = vector.broadcast %cst_40 : f32 to vector<8x8xf32>
    %103 = arith.subf %102, %101 : vector<8x8xf32>
    %104 = arith.mulf %92, %101 : vector<8x8xf32>
    %105 = vector.shape_cast %104 : vector<8x8xf32> to vector<1x8x8xf32>
    %cst_41 = arith.constant dense<0.000000e+00> : vector<1xf32>
    %106 = vector.multi_reduction <add>, %105, %cst_41 [1, 2] : vector<1x8x8xf32> to vector<1xf32>
    %107 = vector.shape_cast %106 : vector<1xf32> to vector<1x1x1xf32>
    %108 = vector.extract %107[0, 0, 0] : f32 from vector<1x1x1xf32>
    %109 = arith.addf %44, %108 : f32
    %110 = vector.shape_cast %101 : vector<8x8xf32> to vector<1x8x8xf32>
    %cst_42 = arith.constant dense<0.000000e+00> : vector<1xf32>
    %111 = vector.multi_reduction <add>, %110, %cst_42 [1, 2] : vector<1x8x8xf32> to vector<1xf32>
    %112 = vector.shape_cast %111 : vector<1xf32> to vector<1x1x1xf32>
    %113 = vector.extract %112[0, 0, 0] : f32 from vector<1x1x1xf32>
    %114 = arith.addf %49, %113 : f32
    %115 = arith.mulf %92, %103 : vector<8x8xf32>
    %116 = vector.shape_cast %115 : vector<8x8xf32> to vector<1x8x8xf32>
    %cst_43 = arith.constant dense<0.000000e+00> : vector<1xf32>
    %117 = vector.multi_reduction <add>, %116, %cst_43 [1, 2] : vector<1x8x8xf32> to vector<1xf32>
    %118 = vector.shape_cast %117 : vector<1xf32> to vector<1x1x1xf32>
    %119 = vector.extract %118[0, 0, 0] : f32 from vector<1x1x1xf32>
    %120 = arith.addf %55, %119 : f32
    %121 = vector.shape_cast %103 : vector<8x8xf32> to vector<1x8x8xf32>
    %cst_44 = arith.constant dense<0.000000e+00> : vector<1xf32>
    %122 = vector.multi_reduction <add>, %121, %cst_44 [1, 2] : vector<1x8x8xf32> to vector<1xf32>
    %123 = vector.shape_cast %122 : vector<1xf32> to vector<1x1x1xf32>
    %124 = vector.extract %123[0, 0, 0] : f32 from vector<1x1x1xf32>
    %125 = arith.addf %60, %124 : f32
    %126 = vector.shape_cast %92 : vector<8x8xf32> to vector<1x8x8xf32>
    %cst_45 = arith.constant dense<0.000000e+00> : vector<1xf32>
    %127 = vector.multi_reduction <add>, %126, %cst_45 [1, 2] : vector<1x8x8xf32> to vector<1xf32>
    %128 = vector.shape_cast %127 : vector<1xf32> to vector<1x1x1xf32>
    %129 = vector.extract %128[0, 0, 0] : f32 from vector<1x1x1xf32>
    %cst_46 = arith.constant 1.562500e-02 : f32
    %130 = arith.mulf %129, %cst_46 : f32
    %131 = vector.broadcast %130 : f32 to vector<8x8xf32>
    %132 = arith.cmpf ole, %92, %131 : vector<8x8xf32>
    %133 = arith.extui %132 : vector<8x8xi1> to vector<8x8xi32>
    %134 = arith.sitofp %133 : vector<8x8xi32> to vector<8x8xf32>
    %135 = arith.mulf %134, %103 : vector<8x8xf32>
    %cst_47 = arith.constant 1.000000e+00 : f32
    %136 = vector.broadcast %cst_47 : f32 to vector<8x8xf32>
    %137 = arith.subf %136, %134 : vector<8x8xf32>
    %138 = arith.mulf %137, %101 : vector<8x8xf32>
    %139 = arith.addf %135, %138 : vector<8x8xf32>
    %140 = vector.shape_cast %139 : vector<8x8xf32> to vector<1x8x8xf32>
    %cst_48 = arith.constant dense<0.000000e+00> : vector<1xf32>
    %141 = vector.multi_reduction <add>, %140, %cst_48 [1, 2] : vector<1x8x8xf32> to vector<1xf32>
    %142 = vector.shape_cast %141 : vector<1xf32> to vector<1x1x1xf32>
    %143 = vector.extract %142[0, 0, 0] : f32 from vector<1x1x1xf32>
    %144 = arith.addf %79, %143 : f32
    %145 = tpu.iota {dimensions = array<i32: 1>} : vector<1x8xi32>
    %c0_i32 = arith.constant 0 : i32
    %146 = vector.broadcast %c0_i32 : i32 to vector<1x8xi32>
    %147 = arith.cmpi eq, %145, %146 : vector<1x8xi32>
    %cst_49 = arith.constant 0.000000e+00 : f32
    %148 = vector.broadcast %109 : f32 to vector<1x8xf32>
    %149 = vector.broadcast %cst_49 : f32 to vector<1x8xf32>
    %150 = arith.select %147, %148, %149 : vector<1x8xi1>, vector<1x8xf32>
    %c1_i32 = arith.constant 1 : i32
    %151 = vector.broadcast %c1_i32 : i32 to vector<1x8xi32>
    %152 = arith.cmpi eq, %145, %151 : vector<1x8xi32>
    %cst_50 = arith.constant 0.000000e+00 : f32
    %153 = vector.broadcast %114 : f32 to vector<1x8xf32>
    %154 = vector.broadcast %cst_50 : f32 to vector<1x8xf32>
    %155 = arith.select %152, %153, %154 : vector<1x8xi1>, vector<1x8xf32>
    %156 = arith.addf %150, %155 : vector<1x8xf32>
    %c2_i32 = arith.constant 2 : i32
    %157 = vector.broadcast %c2_i32 : i32 to vector<1x8xi32>
    %158 = arith.cmpi eq, %145, %157 : vector<1x8xi32>
    %cst_51 = arith.constant 0.000000e+00 : f32
    %159 = vector.broadcast %120 : f32 to vector<1x8xf32>
    %160 = vector.broadcast %cst_51 : f32 to vector<1x8xf32>
    %161 = arith.select %158, %159, %160 : vector<1x8xi1>, vector<1x8xf32>
    %162 = arith.addf %156, %161 : vector<1x8xf32>
    %c3_i32 = arith.constant 3 : i32
    %163 = vector.broadcast %c3_i32 : i32 to vector<1x8xi32>
    %164 = arith.cmpi eq, %145, %163 : vector<1x8xi32>
    %cst_52 = arith.constant 0.000000e+00 : f32
    %165 = vector.broadcast %125 : f32 to vector<1x8xf32>
    %166 = vector.broadcast %cst_52 : f32 to vector<1x8xf32>
    %167 = arith.select %164, %165, %166 : vector<1x8xi1>, vector<1x8xf32>
    %168 = arith.addf %162, %167 : vector<1x8xf32>
    %c4_i32 = arith.constant 4 : i32
    %169 = vector.broadcast %c4_i32 : i32 to vector<1x8xi32>
    %170 = arith.cmpi eq, %145, %169 : vector<1x8xi32>
    %cst_53 = arith.constant 0.000000e+00 : f32
    %171 = vector.broadcast %144 : f32 to vector<1x8xf32>
    %172 = vector.broadcast %cst_53 : f32 to vector<1x8xf32>
    %173 = arith.select %170, %171, %172 : vector<1x8xi1>, vector<1x8xf32>
    %174 = arith.addf %168, %173 : vector<1x8xf32>
    %c0_54 = arith.constant 0 : index
    %c0_55 = arith.constant 0 : index
    %175 = vector.load %arg7[%c0_54, %c0_55] : memref<1x8xf32, #tpu.memory_space<vmem>>, vector<1x8xf32>
    tpu.vector_store %arg7[%c0_54, %c0_55], %174 {strides = array<i32>} : memref<1x8xf32, #tpu.memory_space<vmem>>, vector<1x8xf32>,
    return
  }
  func.func @transform_0(%arg0: i32) -> (i32, i32) {
    %c0_i32 = arith.constant 0 : i32
    %c0_i32_0 = arith.constant 0 : i32
    %c0_i32_1 = arith.constant 0 : i32
    return %c0_i32, %c0_i32_0 : i32, i32
  }
  func.func @transform_1(%arg0: i32) -> (i32, i32) {
    %c0_i32 = arith.constant 0 : i32
    %c0_i32_0 = arith.constant 0 : i32
    %c0_i32_1 = arith.constant 0 : i32
    return %c0_i32, %c0_i32_0 : i32, i32
  }
  func.func @transform_2(%arg0: i32) -> (i32, i32) {
    %c0_i32 = arith.constant 0 : i32
    %c0_i32_0 = arith.constant 0 : i32
    %c0_i32_1 = arith.constant 0 : i32
    return %c0_i32, %c0_i32_0 : i32, i32
  }
  func.func @transform_3(%arg0: i32) -> (i32, i32, i32) {
    %c0_i32 = arith.constant 0 : i32
    %c0_i32_0 = arith.constant 0 : i32
    %c0_i32_1 = arith.constant 0 : i32
    %c0_i32_2 = arith.constant 0 : i32
    return %c0_i32, %c0_i32_0, %c0_i32_1 : i32, i32, i32
  }
  func.func @transform_4(%arg0: i32) -> (i32, i32, i32) {
    %c0_i32 = arith.constant 0 : i32
    %c0_i32_0 = arith.constant 0 : i32
    %c0_i32_1 = arith.constant 0 : i32
    %c0_i32_2 = arith.constant 0 : i32
    return %c0_i32, %c0_i32_0, %c0_i32_1 : i32, i32, i32
  }
  func.func @transform_5(%arg0: i32) -> i32 {
    %c0_i32 = arith.constant 0 : i32
    %c0_i32_0 = arith.constant 0 : i32
    return %c0_i32 : i32
  }
  func.func @transform_6(%arg0: i32) -> (i32, i32) {
    %c0_i32 = arith.constant 0 : i32
    %c0_i32_0 = arith.constant 0 : i32
    %c0_i32_1 = arith.constant 0 : i32
    return %c0_i32, %c0_i32_0 : i32, i32
  }
}

</mosaic_0001>

<llo_original>
// kernel: tpu_custom_call.1
$region0: #{tpu_custom_call.1}
  #allocation0 [shape = 'u32[]', space=smem, size = 0x4, offset = 0x4, fixed_abs, tag = 'smem constant byte address 0x4 - core index']
  #allocation1 [shape = 'u32[72,128]{1,0:T(1,128)}', space=vmem, size = 0x9000, scoped, tag = 'internal scratch']
  #allocation2 [shape = 'f32[1]{0:T(128)S(6)}', space=smem, size = 0x200, scoped, tag = 'scoped memory for tpu_custom_call.1']
  %s0 = inlined_call_operand.vmem [shape: f32[16,16], index: 0, kind: input, shape index: {}]
  %s1 = inlined_call_operand.hbm [shape: f32[16,32], index: 1, kind: input, shape index: {}]
  %s2 = inlined_call_operand.vmem [shape: f32[1,32], index: 2, kind: input, shape index: {}]
  %s3 = inlined_call_operand.vmem [shape: f32[2,1,8], index: 3, kind: input, shape index: {}]
  %s4 = inlined_call_operand.vmem [shape: f32[2,8,1], index: 4, kind: input, shape index: {}]
  %s5 = inlined_call_operand.<no memory space> [shape: f32[1], index: 5, kind: input, shape index: {}]
  %s6 = inlined_call_operand.hbm [shape: f32[1,8], index: 6, kind: output, shape index: {}]
  %s7 = sld [smem:[#allocation0]]
  $region38: #{tpu_custom_call.1} parent=0
    _
  %s9 = ssub.s32 1, %s7
  %s10 = scalar_select 0, %s9, %s7
  %11 = sst [smem:[#allocation2]] %s5
  $region1: #{tpu_custom_call.1} parent=0
    #allocation3 [shape = 'u8[8192]{0}', space=vmem, size = 0x2000, scoped, tag = 'input window, operand 1, single buffered']
    #allocation4 [shape = 's32[1]{0}', space=sflag, size = 0x4, scoped, tag = 'scoped memory for tpu_custom_call.1']
    #allocation5 [shape = 's32[1]{0}', space=sflag, size = 0x4, scoped, tag = 'scoped memory for tpu_custom_call.1']
    #allocation6 [shape = 'u8[512]{0}', space=vmem, size = 0x400, scoped, tag = 'output window, operand 0, single buffered']
    %12 = vsyncpa [#allocation4], 0
    %13 = vsyncpa [#allocation5], 0
    // Predicated region
    $region2: #{tpu_custom_call.1} parent=1 // pred_check
      _
    $region3: #{tpu_custom_call.1} parent=1 // pred_check_branch
      %15 = sbr.rel (0) target = $region5
    $region4: #{tpu_custom_call.1} parent=1 // pred_region
      _
    $region5: #{tpu_custom_call.1} parent=1 // pred_fallthru
      _
    // Predicated region
    $region6: #{tpu_custom_call.1} parent=1 // pred_check
      _
    $region7: #{tpu_custom_call.1} parent=1 // pred_check_branch
      %17 = sbr.rel (0) target = $region9
    $region8: #{tpu_custom_call.1} parent=1 // pred_region
      %19 = vsyncadd [#allocation4], 0
      %s20 = sshll.u32 %s1, 4
      %s21 = int_to_ptr.hbm [resolvable:$true] %s20
      %s22 = sshll.u32 [#allocation3], 4
      %s23 = int_to_ptr.vmem [resolvable:$true] %s22
      %28 = dma.hbm_to_vmem [thread:$0]  %s21, 256, %s23, [#allocation4], 128, 128, 8
    $region9: #{tpu_custom_call.1} parent=1 // pred_fallthru
      _
    // Predicated region
    $region10: #{tpu_custom_call.1} parent=1 // pred_check
      _
    $region11: #{tpu_custom_call.1} parent=1 // pred_check_branch
      %30 = sbr.rel (0) target = $region13
    $region12: #{tpu_custom_call.1} parent=1 // pred_region
      _
    $region13: #{tpu_custom_call.1} parent=1 // pred_fallthru
      _
    // Predicated region
    $region14: #{tpu_custom_call.1} parent=1 // pred_check
      _
    $region15: #{tpu_custom_call.1} parent=1 // pred_check_branch
      %32 = sbr.rel (0) target = $region17
    $region16: #{tpu_custom_call.1} parent=1 // pred_region
      _
    $region17: #{tpu_custom_call.1} parent=1 // pred_fallthru
      _
    // Predicated region
    $region18: #{tpu_custom_call.1} parent=1 // pred_check
      _
    $region19: #{tpu_custom_call.1} parent=1 // pred_check_branch
      %34 = sbr.rel (0) target = $region21
    $region20: #{tpu_custom_call.1} parent=1 // pred_region
      _
    $region21: #{tpu_custom_call.1} parent=1 // pred_fallthru
      _
    // Predicated region
    $region22: #{tpu_custom_call.1} parent=1 // pred_check
      _
    $region23: #{tpu_custom_call.1} parent=1 // pred_check_branch
      %36 = sbr.rel (0) target = $region25
    $region24: #{tpu_custom_call.1} parent=1 // pred_region
      _
    $region25: #{tpu_custom_call.1} parent=1 // pred_fallthru
      _
    // Predicated region
    $region26: #{tpu_custom_call.1} parent=1 // pred_check
      _
    $region27: #{tpu_custom_call.1} parent=1 // pred_check_branch
      %38 = sbr.rel (0) target = $region29
    $region28: #{tpu_custom_call.1} parent=1 // pred_region
      %40 = dma.done [#allocation4], 256
    $region29: #{tpu_custom_call.1} parent=1 // pred_fallthru
      _
    %v41 = vld [vmem:[%s0] sm:$0xff]
    %v42 = vld [vmem:[%s0 + $0x8] sm:$0xff]
    %v43 = vld [vmem:[#allocation3] sm:$0xff]
    %v44 = vld [vmem:[#allocation3 + $0x8] sm:$0xff]
    %v45 = vld [vmem:[%s2] sm:$0x1]
    %v47 = vperm.slane %v45, 0
    %vm49 = vcmask 130048
    %v51 = vsel %vm49, %v41, 0
    %v54 = vsel %vm49, %v42, 0
    %56 = vmatpush.msra.mxu0 0.0
    %57 = vmatpush.msra.mxu0 0.0
    %58 = vmatpush.msra.mxu0 0.0
    %59 = vmatpush.msra.mxu0 0.0
    %60 = vmatpush.msra.mxu0 0.0
    %61 = vmatpush.msra.mxu0 0.0
    %62 = vmatpush.msra.mxu0 0.0
    %63 = vmatpush.msra.mxu0 0.0
    %64 = vmatpush.msra.mxu0 0.0
    %65 = vmatpush.msra.mxu0 0.0
    %66 = vmatpush.msra.mxu0 0.0
    %67 = vmatpush.msra.mxu0 0.0
    %68 = vmatpush.msra.mxu0 0.0
    %69 = vmatpush.msra.mxu0 0.0
    %70 = vmatpush.msra.mxu0 %v44
    %71 = vmatpush.msra.mxu0 %v43
    %72 = vmatmul.f32.gmra.mxu0 %v51
    %v73 = vpop.f32.mrf.mxu0
    %v74 = vadd.f32 %v47, %v73
    %75 = vmatmul.f32.gmra.mxu0 %v54
    %v76 = vpop.f32.mrf.mxu0
    %v77 = vadd.f32 %v47, %v76
    %78 = vdwg.mxu0
    %v79 = vtanh.pop %v74
    %v80 = vtanh.pop %v77
    %s81 = sld [smem:[#allocation2]]
    %v82 = vstv %s81
    %v83 = vmul.f32 %v79, %v82
    %v84 = vmul.f32 %v80, %v82
    %v85 = vmul.f32 %v83, %v83
    %v86 = vmul.f32 %v84, %v84
    %vm87 = vcmask 261120
    %v88 = vsel %vm87, %v85, 0.0
    %89 = vadd.xlane.f32.xlu0 %v88
    %v90 = vpop.xlane.xlu0 %89
    %v91 = vsel %vm87, %v86, 0.0
    %92 = vadd.xlane.f32.xlu0 %v91
    %v93 = vpop.xlane.xlu0 %92
    %v95 = vsel %vm87, 1.0, 0
    %v98 = vsel %vm87, %v85, 0
    %v101 = vsel %vm87, %v86, 0
    %103 = vmatpush.xpose.msra.mxu0 0.0
    %104 = vmatpush.xpose.msra.mxu0 0.0
    %105 = vmatpush.xpose.msra.mxu0 0.0
    %106 = vmatpush.xpose.msra.mxu0 0.0
    %107 = vmatpush.xpose.msra.mxu0 0.0
    %108 = vmatpush.xpose.msra.mxu0 0.0
    %109 = vmatpush.xpose.msra.mxu0 0.0
    %110 = vmatpush.xpose.msra.mxu0 0.0
    %111 = vmatpush.xpose.msra.mxu0 0.0
    %112 = vmatpush.xpose.msra.mxu0 0.0
    %113 = vmatpush.xpose.msra.mxu0 0.0
    %114 = vmatpush.xpose.msra.mxu0 0.0
    %115 = vmatpush.xpose.msra.mxu0 0.0
    %116 = vmatpush.xpose.msra.mxu0 0.0
    %117 = vmatpush.xpose.msra.mxu0 %v101
    %118 = vmatpush.xpose.msra.mxu0 %v98
    %119 = vmatmul.f32.gmra.mxu0 %v95
    %v120 = vpop.f32.mrf.mxu0
    %v121 = vadd.f32 0.0, %v120
    %122 = vdwg.mxu0
    %v124 = vsel %vm87, %v83, 0
    %126 = vmatpush.xpose.msra.mxu0 0.0
    %127 = vmatpush.xpose.msra.mxu0 0.0
    %128 = vmatpush.xpose.msra.mxu0 0.0
    %129 = vmatpush.xpose.msra.mxu0 0.0
    %130 = vmatpush.xpose.msra.mxu0 0.0
    %131 = vmatpush.xpose.msra.mxu0 0.0
    %132 = vmatpush.xpose.msra.mxu0 0.0
    %133 = vmatpush.xpose.msra.mxu0 0.0
    %134 = vmatpush.xpose.msra.mxu0 0.0
    %135 = vmatpush.xpose.msra.mxu0 0.0
    %136 = vmatpush.xpose.msra.mxu0 0.0
    %137 = vmatpush.xpose.msra.mxu0 0.0
    %138 = vmatpush.xpose.msra.mxu0 0.0
    %139 = vmatpush.xpose.msra.mxu0 0.0
    %140 = vmatpush.xpose.msra.mxu0 0.0
    %141 = vmatpush.xpose.msra.mxu0 %v124
    %142 = vmatmul.f32.gmra.mxu0 %v124
    %v143 = vpop.f32.mrf.mxu0
    %v144 = vadd.f32 0.0, %v143
    %145 = vdwg.mxu0
    %v146 = vperm.slane %v121, 0
    %v147 = vadd.f32 %v90, %v146
    %v148 = vmul.f32 %v144, 2.0
    %v149 = vsub.f32 %v147, %v148
    %v150 = vmax.f32 %v149, 0.0
    %v151 = vrsqrt.pop %v150
    %v152 = vmul.f32 %v151, %v150
    %v153 = vmul.f32 %v152, %v151
    %v154 = vmul.f32 0.5, %v153
    %v155 = vsub.f32 1.5, %v154
    %v156 = vmul.f32 %v151, %v155
    %v157 = vmul.f32 %v150, %v156
    %vm158 = vcmp.eq.f32.partialorder %v150, inf
    %v159 = vsel %vm158, %v150, %v157
    %vm160 = vcmp.eq.f32.partialorder %v150, 0.0
    %v161 = vand.u32 %v150, 2147483648
    %v162 = vsel %vm160, %v161, %v159
    %v163 = vld [vmem:[%s3] sm:$0x1]
    %v164 = vld [vmem:[%s4] sm:$0xff]
    %v166 = vperm.slane %v163, 0
    %169 = vset.pattern.permute.xlu0 0
    %170 = vperm.xlu0 %169, %v164
    %v171 = vpop.permute.xlu0 %170
    %vm173 = vcmp.eq.f32.partialorder %v166, %v171
    %v174 = vsel %vm173, 1, 0
    %v175 = vcvt.s32.f32 %v174
    %v176 = vsub.f32 1.0, %v175
    %v177 = vmul.f32 %v162, %v175
    %vm178 = vcmask 64512
    %v179 = vsel %vm178, %v177, 0.0
    %180 = vadd.xlane.f32.xlu0 %v179
    %v181 = vpop.xlane.xlu0 %180
    %v182 = vrot.slane %v181, 4
    %v183 = vadd.f32 %v181, %v182
    %v184 = vrot.slane %v183, 2
    %v185 = vadd.f32 %v183, %v184
    %v186 = vrot.slane %v185, 1
    %v187 = vadd.f32 %v185, %v186
    %s188 = vtos %v187
    %s189 = sadd.f32 %s188, 0.0
    %v190 = vsel %vm178, %v175, 0.0
    %191 = vadd.xlane.f32.xlu0 %v190
    %v192 = vpop.xlane.xlu0 %191
    %v193 = vrot.slane %v192, 4
    %v194 = vadd.f32 %v192, %v193
    %v195 = vrot.slane %v194, 2
    %v196 = vadd.f32 %v194, %v195
    %v197 = vrot.slane %v196, 1
    %v198 = vadd.f32 %v196, %v197
    %s199 = vtos %v198
    %s200 = sadd.f32 %s199, 0.0
    %v201 = vmul.f32 %v162, %v176
    %v202 = vsel %vm178, %v201, 0.0
    %203 = vadd.xlane.f32.xlu0 %v202
    %v204 = vpop.xlane.xlu0 %203
    %v205 = vrot.slane %v204, 4
    %v206 = vadd.f32 %v204, %v205
    %v207 = vrot.slane %v206, 2
    %v208 = vadd.f32 %v206, %v207
    %v209 = vrot.slane %v208, 1
    %v210 = vadd.f32 %v208, %v209
    %s211 = vtos %v210
    %s212 = sadd.f32 %s211, 0.0
    %v213 = vsel %vm178, %v176, 0.0
    %214 = vadd.xlane.f32.xlu0 %v213
    %v215 = vpop.xlane.xlu0 %214
    %v216 = vrot.slane %v215, 4
    %v217 = vadd.f32 %v215, %v216
    %v218 = vrot.slane %v217, 2
    %v219 = vadd.f32 %v217, %v218
    %v220 = vrot.slane %v219, 1
    %v221 = vadd.f32 %v219, %v220
    %s222 = vtos %v221
    %s223 = sadd.f32 %s222, 0.0
    %v224 = vsel %vm178, %v162, 0.0
    %225 = vadd.xlane.f32.xlu0 %v224
    %v226 = vpop.xlane.xlu0 %225
    %v227 = vrot.slane %v226, 4
    %v228 = vadd.f32 %v226, %v227
    %v229 = vrot.slane %v228, 2
    %v230 = vadd.f32 %v228, %v229
    %v231 = vrot.slane %v230, 1
    %v232 = vadd.f32 %v230, %v231
    %s233 = vtos %v232
    %s234 = smul.f32 %s233, 0.015625
    %v235 = vstv %s234
    %vm236 = vcmp.le.f32.partialorder %v162, %v235
    %v237 = vsel %vm236, 1, 0
    %v238 = vcvt.s32.f32 %v237
    %v239 = vmul.f32 %v238, %v176
    %v240 = vsub.f32 1.0, %v238
    %v241 = vmul.f32 %v240, %v175
    %v242 = vadd.f32 %v239, %v241
    %v243 = vsel %vm178, %v242, 0.0
    %244 = vadd.xlane.f32.xlu0 %v243
    %v245 = vpop.xlane.xlu0 %244
    %v246 = vrot.slane %v245, 4
    %v247 = vadd.f32 %v245, %v246
    %v248 = vrot.slane %v247, 2
    %v249 = vadd.f32 %v247, %v248
    %v250 = vrot.slane %v249, 1
    %v251 = vadd.f32 %v249, %v250
    %s252 = vtos %v251
    %s253 = sadd.f32 %s252, 0.0
    %v255 = vsel %vm87, %v84, 0
    %257 = vmatpush.xpose.msra.mxu0 0.0
    %258 = vmatpush.xpose.msra.mxu0 0.0
    %259 = vmatpush.xpose.msra.mxu0 0.0
    %260 = vmatpush.xpose.msra.mxu0 0.0
    %261 = vmatpush.xpose.msra.mxu0 0.0
    %262 = vmatpush.xpose.msra.mxu0 0.0
    %263 = vmatpush.xpose.msra.mxu0 0.0
    %264 = vmatpush.xpose.msra.mxu0 0.0
    %265 = vmatpush.xpose.msra.mxu0 0.0
    %266 = vmatpush.xpose.msra.mxu0 0.0
    %267 = vmatpush.xpose.msra.mxu0 0.0
    %268 = vmatpush.xpose.msra.mxu0 0.0
    %269 = vmatpush.xpose.msra.mxu0 0.0
    %270 = vmatpush.xpose.msra.mxu0 0.0
    %271 = vmatpush.xpose.msra.mxu0 0.0
    %272 = vmatpush.xpose.msra.mxu0 %v255
    %273 = vmatmul.f32.gmra.mxu0 %v255
    %v274 = vpop.f32.mrf.mxu0
    %v275 = vadd.f32 0.0, %v274
    %276 = vdwg.mxu0
    %v277 = vadd.f32 %v93, %v146
    %v278 = vmul.f32 %v275, 2.0
    %280 = vrot.lane.b32.xlu0 %v278, 8
    %v281 = vpop.permute.xlu0 %280
    %v283 = vsub.f32 %v277, %v281
    %v284 = vmax.f32 %v283, 0.0
    %v285 = vrsqrt.pop %v284
    %v286 = vmul.f32 %v285, %v284
    %v287 = vmul.f32 %v286, %v285
    %v288 = vmul.f32 0.5, %v287
    %v289 = vsub.f32 1.5, %v288
    %v290 = vmul.f32 %v285, %v289
    %v291 = vmul.f32 %v284, %v290
    %vm292 = vcmp.eq.f32.partialorder %v284, inf
    %v293 = vsel %vm292, %v284, %v291
    %vm294 = vcmp.eq.f32.partialorder %v284, 0.0
    %v295 = vand.u32 %v284, 2147483648
    %v296 = vsel %vm294, %v295, %v293
    %s297 = scalar_lea.vmem %s3, 1
    %v298 = vld [vmem:[%s297] sm:$0x1]
    %s299 = scalar_lea.vmem %s4, 8
    %v300 = vld [vmem:[%s299] sm:$0xff]
    %v302 = vperm.slane %v298, 0
    %305 = vset.pattern.permute.xlu0 0
    %306 = vperm.xlu0 %305, %v300
    %v307 = vpop.permute.xlu0 %306
    %vm309 = vcmp.eq.f32.partialorder %v302, %v307
    %v310 = vsel %vm309, 1, 0
    %v311 = vcvt.s32.f32 %v310
    %v312 = vsub.f32 1.0, %v311
    %314 = vrot.lane.b32.xlu0 %v311, 8
    %v315 = vpop.permute.xlu0 %314
    %v317 = vmul.f32 %v296, %v315
    %319 = vrot.lane.b32.xlu0 %v317, 120
    %v320 = vpop.permute.xlu0 %319
    %v322 = vsel %vm178, %v320, 0.0
    %323 = vadd.xlane.f32.xlu0 %v322
    %v324 = vpop.xlane.xlu0 %323
    %v325 = vrot.slane %v324, 4
    %v326 = vadd.f32 %v324, %v325
    %v327 = vrot.slane %v326, 2
    %v328 = vadd.f32 %v326, %v327
    %v329 = vrot.slane %v328, 1
    %v330 = vadd.f32 %v328, %v329
    %s331 = vtos %v330
    %s332 = sadd.f32 %s189, %s331
    %v333 = vsel %vm178, %v311, 0.0
    %334 = vadd.xlane.f32.xlu0 %v333
    %v335 = vpop.xlane.xlu0 %334
    %v336 = vrot.slane %v335, 4
    %v337 = vadd.f32 %v335, %v336
    %v338 = vrot.slane %v337, 2
    %v339 = vadd.f32 %v337, %v338
    %v340 = vrot.slane %v339, 1
    %v341 = vadd.f32 %v339, %v340
    %s342 = vtos %v341
    %s343 = sadd.f32 %s200, %s342
    %345 = vrot.lane.b32.xlu0 %v312, 8
    %v346 = vpop.permute.xlu0 %345
    %v348 = vmul.f32 %v296, %v346
    %350 = vrot.lane.b32.xlu0 %v348, 120
    %v351 = vpop.permute.xlu0 %350
    %v353 = vsel %vm178, %v351, 0.0
    %354 = vadd.xlane.f32.xlu0 %v353
    %v355 = vpop.xlane.xlu0 %354
    %v356 = vrot.slane %v355, 4
    %v357 = vadd.f32 %v355, %v356
    %v358 = vrot.slane %v357, 2
    %v359 = vadd.f32 %v357, %v358
    %v360 = vrot.slane %v359, 1
    %v361 = vadd.f32 %v359, %v360
    %s362 = vtos %v361
    %s363 = sadd.f32 %s212, %s362
    %v364 = vsel %vm178, %v312, 0.0
    %365 = vadd.xlane.f32.xlu0 %v364
    %v366 = vpop.xlane.xlu0 %365
    %v367 = vrot.slane %v366, 4
    %v368 = vadd.f32 %v366, %v367
    %v369 = vrot.slane %v368, 2
    %v370 = vadd.f32 %v368, %v369
    %v371 = vrot.slane %v370, 1
    %v372 = vadd.f32 %v370, %v371
    %s373 = vtos %v372
    %s374 = sadd.f32 %s223, %s373
    %376 = vrot.lane.b32.xlu0 %v296, 120
    %v377 = vpop.permute.xlu0 %376
    %v379 = vsel %vm178, %v377, 0.0
    %380 = vadd.xlane.f32.xlu0 %v379
    %v381 = vpop.xlane.xlu0 %380
    %v382 = vrot.slane %v381, 4
    %v383 = vadd.f32 %v381, %v382
    %v384 = vrot.slane %v383, 2
    %v385 = vadd.f32 %v383, %v384
    %v386 = vrot.slane %v385, 1
    %v387 = vadd.f32 %v385, %v386
    %s388 = vtos %v387
    %s389 = smul.f32 %s388, 0.015625
    %v390 = vstv %s389
    %vm391 = vcmp.le.f32.partialorder %v296, %v390
    %v392 = vsel %vm391, 1, 0
    %v393 = vcvt.s32.f32 %v392
    %v394 = vmul.f32 %v393, %v346
    %v395 = vsub.f32 1.0, %v393
    %v396 = vmul.f32 %v395, %v315
    %v397 = vadd.f32 %v394, %v396
    %399 = vrot.lane.b32.xlu0 %v397, 120
    %v400 = vpop.permute.xlu0 %399
    %v402 = vsel %vm178, %v400, 0.0
    %403 = vadd.xlane.f32.xlu0 %v402
    %v404 = vpop.xlane.xlu0 %403
    %v405 = vrot.slane %v404, 4
    %v406 = vadd.f32 %v404, %v405
    %v407 = vrot.slane %v406, 2
    %v408 = vadd.f32 %v406, %v407
    %v409 = vrot.slane %v408, 1
    %v410 = vadd.f32 %v408, %v409
    %s411 = vtos %v410
    %s412 = sadd.f32 %s253, %s411
    %v413 = vlaneseq
    %v414 = vand.u32 %v413, 127
    %vm415 = vcmp.eq.s32.totalorder %v414, 0
    %v416 = vstv %s332
    %v417 = vsel %vm415, %v416, 0.0
    %vm418 = vcmp.eq.s32.totalorder %v414, 1
    %v419 = vstv %s343
    %v420 = vsel %vm418, %v419, 0.0
    %v421 = vadd.f32 %v417, %v420
    %vm422 = vcmp.eq.s32.totalorder %v414, 2
    %v423 = vstv %s363
    %v424 = vsel %vm422, %v423, 0.0
    %v425 = vadd.f32 %v421, %v424
    %vm426 = vcmp.eq.s32.totalorder %v414, 3
    %v427 = vstv %s374
    %v428 = vsel %vm426, %v427, 0.0
    %v429 = vadd.f32 %v425, %v428
    %vm430 = vcmp.eq.s32.totalorder %v414, 4
    %v431 = vstv %s412
    %v432 = vsel %vm430, %v431, 0.0
    %v433 = vadd.f32 %v429, %v432
    %vm434 = vcmask 57344
    %435 = vst.msk [vmem:[#allocation6] sm:$0x1] %vm434, %v433
    // Predicated region
    $region30: #{tpu_custom_call.1} parent=1 // pred_check
      _
    $region31: #{tpu_custom_call.1} parent=1 // pred_check_branch
      %437 = sbr.rel (0) target = $region33
    $region32: #{tpu_custom_call.1} parent=1 // pred_region
      %439 = vsyncadd [#allocation5], 0
      %s441 = sshll.u32 [#allocation6], 4
      %s442 = int_to_ptr.vmem [resolvable:$true] %s441
      %s443 = sshll.u32 %s6, 4
      %s444 = int_to_ptr.hbm [resolvable:$true] %s443
      %446 = dma.vmem_to_hbm [thread:$0]  %s442, 16, %s444, [#allocation5]
    $region33: #{tpu_custom_call.1} parent=1 // pred_fallthru
      _
    // Predicated region
    $region34: #{tpu_custom_call.1} parent=1 // pred_check
      _
    $region35: #{tpu_custom_call.1} parent=1 // pred_check_branch
      %448 = sbr.rel (0) target = $region37
    $region36: #{tpu_custom_call.1} parent=1 // pred_region
      %450 = dma.done [#allocation5], 16
    $region37: #{tpu_custom_call.1} parent=1 // pred_fallthru
      _
    %451 = vsyncpa [#allocation4], 1
    %452 = vsyncpa [#allocation5], 1

</llo_original>
